<compile_context>
chip_gen: v6e
topology: v6e:2x2x1
jax: 0.10.0
libtpu: 0.0.40
codegen_flags: <defaults>
</compile_context>

<pallas_src>
import jax
import jax.numpy as jnp
import numpy as np
from jax.experimental import pallas as pl
from jax.experimental.pallas import tpu as pltpu


def _mlp_kernel(xt_ref, w1_ref, b1_ref, w2_ref, b2_ref, w3_ref, b3_ref, o_ref):
    # Feature-major: batch is the lane (last) dim everywhere, so all VPU/EUP
    # work (tanh, sigmoid, bias adds) runs on lane-dense vregs and the final
    # store is an unmasked wide vst.
    # Layer 1: W1 [H1, IN] @ x^T [IN, Bt] -> [H1, Bt], then tanh (EUP).
    h1 = jnp.dot(w1_ref[...], xt_ref[...], preferred_element_type=jnp.float32)
    h1 = jnp.tanh(h1 + b1_ref[...])
    # Layer 2: W2 [H2, H1] @ h1 -> [H2, Bt], then tanh.
    h2 = jnp.dot(w2_ref[...], h1, preferred_element_type=jnp.float32)
    h2 = jnp.tanh(h2 + b2_ref[...])
    # Layer 3: W3 [OUT, H2] @ h2 -> [OUT, Bt], then sigmoid. Lane-dense store.
    z = jnp.dot(w3_ref[...], h2, preferred_element_type=jnp.float32) + b3_ref[...]
    o_ref[...] = jax.nn.sigmoid(z).astype(o_ref.dtype)


def lj7_2_forward(x, params, *, batch_tile=None, return_transposed=False):
    """Forward pass of LJ7_2.

    x: [B, in_size] float32.
    params: dict with PyTorch-native layouts:
        w1 [hidden, in_size],  b1 [hidden, 1]
        w2 [hidden2, hidden],  b2 [hidden2, 1]
        w3 [out_size, hidden2], b3 [out_size, 1]

    batch_tile=None (default) runs the whole batch in one grid step — optimal
    for the KiB-scale working sets this model sees.  For very large B pass a
    batch_tile that is a multiple of 128; 2048-8192 is recommended so the
    ~0.35us/step pipeline overhead is amortized, and using >=2 tiles lets the
    "parallel" grid axis shard across both TensorCores on v7x.  With the
    feature-major layout each tile costs only ~batch_tile*4B per feature row
    of VMEM, so 8192 fits every generation's default scoped VMEM easily.

    return_transposed=True returns the kernel's native [out_size, B] layout
    (zero-copy); default returns [B, out_size] to match the PyTorch module.
    """
    w1, b1, w2, b2, w3, b3 = (
        params["w1"], params["b1"], params["w2"],
        params["b2"], params["w3"], params["b3"],
    )
    B, in_size = x.shape
    hidden = w1.shape[0]
    hidden2 = w2.shape[0]
    out_size = w3.shape[0]

    # Default: single grid step (whole working set fits in VMEM many times
    # over on v5e/v6e/v7x). Only tile when the caller explicitly asks for it.
    if batch_tile is None or batch_tile >= B:
        batch_tile = B

    num_tiles = pl.cdiv(B, batch_tile)
    if num_tiles > 1:
        # Tiled path: keep tiles (8,128)-legal on the lane dim.
        assert batch_tile % 128 == 0, (
            "when tiling the batch, use a batch_tile that is a multiple of 128")
    Bp = num_tiles * batch_tile

    # Feature-major input: [in_size, B] so batch sits on the lane dim.
    xt = x.T
    if Bp != B:
        xt = jnp.pad(xt, ((0, 0), (0, Bp - B)))

    full = lambda i: (0, 0)

    out_t = pl.pallas_call(
        _mlp_kernel,
        # Kernel-native output: [out_size, Bp] -> lane-dense stores.
        out_shape=jax.ShapeDtypeStruct((out_size, Bp), jnp.float32),
        grid_spec=pltpu.PrefetchScalarGridSpec(
            num_scalar_prefetch=0,
            grid=(num_tiles,),
            in_specs=[
                pl.BlockSpec((in_size, batch_tile), lambda i: (0, i)),  # x^T tile
                pl.BlockSpec((hidden, in_size), full),                  # W1
                pl.BlockSpec((hidden, 1), full),                        # b1 (col)
                pl.BlockSpec((hidden2, hidden), full),                  # W2
                pl.BlockSpec((hidden2, 1), full),                       # b2 (col)
                pl.BlockSpec((out_size, hidden2), full),                # W3
                pl.BlockSpec((out_size, 1), full),                      # b3 (col)
            ],
            out_specs=pl.BlockSpec((out_size, batch_tile), lambda i: (0, i)),
        ),
        compiler_params=pltpu.CompilerParams(
            dimension_semantics=("parallel",)),
    )(xt, w1, b1, w2, b2, w3, b3)

    if Bp != B:
        out_t = out_t[:, :B]
    if return_transposed:
        return out_t            # [out_size, B], zero extra copies
    # Match the PyTorch module's [B, out_size] (for out_size == 1 this is
    # just a reshape).
    return out_t.T


def init_params(key, in_size, hidden_size, hidden_size2, out_size):
    """Deterministic init mimicking nn.Linear's uniform(-1/sqrt(fan_in), ...).
    Weights kept in PyTorch-native [out_features, in_features] layout; biases
    stored as column vectors [out_features, 1] for the feature-major kernel."""
    ks = jax.random.split(key, 6)

    def linear(kw, kb, fan_in, fan_out):
        bound = 1.0 / np.sqrt(fan_in)
        w = jax.random.uniform(kw, (fan_out, fan_in), jnp.float32, -bound, bound)
        b = jax.random.uniform(kb, (fan_out, 1), jnp.float32, -bound, bound)
        return w, b

    w1, b1 = linear(ks[0], ks[1], in_size, hidden_size)
    w2, b2 = linear(ks[2], ks[3], hidden_size, hidden_size2)
    w3, b3 = linear(ks[4], ks[5], hidden_size2, out_size)
    return {"w1": w1, "b1": b1, "w2": w2, "b2": b2, "w3": w3, "b3": b3}


def _reference(x, p):
    h1 = jnp.tanh(x @ p["w1"].T + p["b1"].T)
    h2 = jnp.tanh(h1 @ p["w2"].T + p["b2"].T)
    return jax.nn.sigmoid(h2 @ p["w3"].T + p["b3"].T)


if __name__ == "__main__":
    # LJ7 in 2D: 7 particles x 2 coords = 14 input features; 1 output (committor).
    in_size, hidden_size, hidden_size2, out_size = 14, 32, 32, 1
    batch = 128

    key = jax.random.PRNGKey(0)
    k_x, k_p = jax.random.split(key)
    x = jax.random.normal(k_x, (batch, in_size), dtype=jnp.float32)
    params = init_params(k_p, in_size, hidden_size, hidden_size2, out_size)

    # Default path: single grid step, feature-major (lane-dense) compute + store.
    out = jax.block_until_ready(lj7_2_forward(x, params))
    ref = _reference(x, params)
    np.testing.assert_allclose(np.asarray(out), np.asarray(ref),
                               rtol=1e-5, atol=1e-5)

    # Tiled path with a non-multiple batch (exercises padding + cdiv grid and
    # multi-tile "parallel" sharding on v7x).
    x2 = jax.random.normal(jax.random.PRNGKey(1), (300, in_size),
                           dtype=jnp.float32)
    out2 = jax.block_until_ready(lj7_2_forward(x2, params, batch_tile=128))
    ref2 = _reference(x2, params)
    np.testing.assert_allclose(np.asarray(out2), np.asarray(ref2),
                               rtol=1e-5, atol=1e-5)

    # Zero-copy transposed output path.
    out3 = jax.block_until_ready(
        lj7_2_forward(x, params, return_transposed=True))
    np.testing.assert_allclose(np.asarray(out3), np.asarray(ref).T,
                               rtol=1e-5, atol=1e-5)

    print("KERNEL_OK")
</pallas_src>

<mosaic_0001>
module attributes {stable_mosaic.version = 11 : i64} {
  func.func @_mlp_kernel(%arg0: i32, %arg1: memref<14x128xf32, #tpu.memory_space<vmem>>, %arg2: memref<32x14xf32, #tpu.memory_space<vmem>>, %arg3: memref<32x1xf32, #tpu.memory_space<vmem>>, %arg4: memref<32x32xf32, #tpu.memory_space<vmem>>, %arg5: memref<32x1xf32, #tpu.memory_space<vmem>>, %arg6: memref<1x32xf32, #tpu.memory_space<vmem>>, %arg7: memref<1x1xf32, #tpu.memory_space<vmem>>, %arg8: memref<1x128xf32, #tpu.memory_space<vmem>>) attributes {dimension_semantics = [#tpu.dimension_semantics<parallel>], iteration_bounds = array<i64: 1>, scalar_prefetch = 0 : i64, scratch_operands = 0 : i64, tpu.core_type = #tpu.core_type<tc>, window_params = [{transform_indices = @transform_0, window_bounds = array<i64: 14, 128>}, {pipeline_mode = #tpu.pipeline_mode<synchronous>, transform_indices = @transform_1, window_bounds = array<i64: 32, 14>}, {pipeline_mode = #tpu.pipeline_mode<synchronous>, transform_indices = @transform_2, window_bounds = array<i64: 32, 1>}, {pipeline_mode = #tpu.pipeline_mode<synchronous>, transform_indices = @transform_3, window_bounds = array<i64: 32, 32>}, {pipeline_mode = #tpu.pipeline_mode<synchronous>, transform_indices = @transform_4, window_bounds = array<i64: 32, 1>}, {pipeline_mode = #tpu.pipeline_mode<synchronous>, transform_indices = @transform_5, window_bounds = array<i64: 1, 32>}, {pipeline_mode = #tpu.pipeline_mode<synchronous>, transform_indices = @transform_6, window_bounds = array<i64: 1, 1>}, {transform_indices = @transform_7, window_bounds = array<i64: 1, 128>}]} {
    %c0 = arith.constant 0 : index
    %c0_0 = arith.constant 0 : index
    %0 = vector.load %arg2[%c0, %c0_0] : memref<32x14xf32, #tpu.memory_space<vmem>>, vector<32x14xf32>
    %c0_1 = arith.constant 0 : index
    %c0_2 = arith.constant 0 : index
    %1 = vector.load %arg1[%c0_1, %c0_2] : memref<14x128xf32, #tpu.memory_space<vmem>>, vector<14x128xf32>
    %cst = arith.constant dense<0.000000e+00> : vector<32x128xf32>
    %2 = tpu.matmul %0, %1, %cst {dimension_numbers = #tpu.dot_dimension_numbers<[1], [0], [0], [1], [0, 0, 1, 1], [], []>} : vector<32x14xf32>, vector<14x128xf32>, vector<32x128xf32> -> vector<32x128xf32>
    %c0_3 = arith.constant 0 : index
    %c0_4 = arith.constant 0 : index
    %3 = vector.load %arg3[%c0_3, %c0_4] : memref<32x1xf32, #tpu.memory_space<vmem>>, vector<32x1xf32>
    %4 = vector.broadcast %3 : vector<32x1xf32> to vector<32x128xf32>
    %5 = arith.addf %2, %4 : vector<32x128xf32>
    %6 = math.tanh %5 : vector<32x128xf32>
    %c0_5 = arith.constant 0 : index
    %c0_6 = arith.constant 0 : index
    %7 = vector.load %arg4[%c0_5, %c0_6] : memref<32x32xf32, #tpu.memory_space<vmem>>, vector<32x32xf32>
    %cst_7 = arith.constant dense<0.000000e+00> : vector<32x128xf32>
    %8 = tpu.matmul %7, %6, %cst_7 {dimension_numbers = #tpu.dot_dimension_numbers<[1], [0], [0], [1], [0, 0, 1, 1], [], []>} : vector<32x32xf32>, vector<32x128xf32>, vector<32x128xf32> -> vector<32x128xf32>
    %c0_8 = arith.constant 0 : index
    %c0_9 = arith.constant 0 : index
    %9 = vector.load %arg5[%c0_8, %c0_9] : memref<32x1xf32, #tpu.memory_space<vmem>>, vector<32x1xf32>
    %10 = vector.broadcast %9 : vector<32x1xf32> to vector<32x128xf32>
    %11 = arith.addf %8, %10 : vector<32x128xf32>
    %12 = math.tanh %11 : vector<32x128xf32>
    %c0_10 = arith.constant 0 : index
    %c0_11 = arith.constant 0 : index
    %13 = vector.load %arg6[%c0_10, %c0_11] : memref<1x32xf32, #tpu.memory_space<vmem>>, vector<1x32xf32>
    %cst_12 = arith.constant dense<0.000000e+00> : vector<1x128xf32>
    %14 = tpu.matmul %13, %12, %cst_12 {dimension_numbers = #tpu.dot_dimension_numbers<[1], [0], [0], [1], [0, 0, 1, 1], [], []>} : vector<1x32xf32>, vector<32x128xf32>, vector<1x128xf32> -> vector<1x128xf32>
    %c0_13 = arith.constant 0 : index
    %c0_14 = arith.constant 0 : index
    %15 = vector.load %arg7[%c0_13, %c0_14] : memref<1x1xf32, #tpu.memory_space<vmem>>, vector<1x1xf32>
    %16 = vector.broadcast %15 : vector<1x1xf32> to vector<1x128xf32>
    %17 = arith.addf %14, %16 : vector<1x128xf32>
    %18 = arith.negf %17 : vector<1x128xf32>
    %19 = math.exp %18 : vector<1x128xf32>
    %cst_15 = arith.constant 1.000000e+00 : f32
    %20 = vector.broadcast %cst_15 : f32 to vector<1x128xf32>
    %21 = arith.addf %20, %19 : vector<1x128xf32>
    %22 = arith.divf %20, %21 : vector<1x128xf32>
    %c0_16 = arith.constant 0 : index
    %c0_17 = arith.constant 0 : index
    %23 = vector.load %arg8[%c0_16, %c0_17] : memref<1x128xf32, #tpu.memory_space<vmem>>, vector<1x128xf32>
    tpu.vector_store %arg8[%c0_16, %c0_17], %22 {strides = array<i32>} : memref<1x128xf32, #tpu.memory_space<vmem>>, vector<1x128xf32>,
    return
  }
  func.func @transform_0(%arg0: i32) -> (i32, i32) {
    %c0_i32 = arith.constant 0 : i32
    %c0_i32_0 = arith.constant 0 : i32
    return %c0_i32, %arg0 : i32, i32
  }
  func.func @transform_1(%arg0: i32) -> (i32, i32) {
    %c0_i32 = arith.constant 0 : i32
    %c0_i32_0 = arith.constant 0 : i32
    %c0_i32_1 = arith.constant 0 : i32
    return %c0_i32, %c0_i32_0 : i32, i32
  }
  func.func @transform_2(%arg0: i32) -> (i32, i32) {
    %c0_i32 = arith.constant 0 : i32
    %c0_i32_0 = arith.constant 0 : i32
    %c0_i32_1 = arith.constant 0 : i32
    return %c0_i32, %c0_i32_0 : i32, i32
  }
  func.func @transform_3(%arg0: i32) -> (i32, i32) {
    %c0_i32 = arith.constant 0 : i32
    %c0_i32_0 = arith.constant 0 : i32
    %c0_i32_1 = arith.constant 0 : i32
    return %c0_i32, %c0_i32_0 : i32, i32
  }
  func.func @transform_4(%arg0: i32) -> (i32, i32) {
    %c0_i32 = arith.constant 0 : i32
    %c0_i32_0 = arith.constant 0 : i32
    %c0_i32_1 = arith.constant 0 : i32
    return %c0_i32, %c0_i32_0 : i32, i32
  }
  func.func @transform_5(%arg0: i32) -> (i32, i32) {
    %c0_i32 = arith.constant 0 : i32
    %c0_i32_0 = arith.constant 0 : i32
    %c0_i32_1 = arith.constant 0 : i32
    return %c0_i32, %c0_i32_0 : i32, i32
  }
  func.func @transform_6(%arg0: i32) -> (i32, i32) {
    %c0_i32 = arith.constant 0 : i32
    %c0_i32_0 = arith.constant 0 : i32
    %c0_i32_1 = arith.constant 0 : i32
    return %c0_i32, %c0_i32_0 : i32, i32
  }
  func.func @transform_7(%arg0: i32) -> (i32, i32) {
    %c0_i32 = arith.constant 0 : i32
    %c0_i32_0 = arith.constant 0 : i32
    return %c0_i32, %arg0 : i32, i32
  }
}

</mosaic_0001>

<llo_original>
// kernel: tpu_custom_call.1
$region0: #{tpu_custom_call.1}
  #allocation0 [shape = 'u32[]', space=smem, size = 0x4, offset = 0x4, fixed_abs, tag = 'smem constant byte address 0x4 - core index']
  #allocation1 [shape = 'u32[144,128]{1,0:T(1,128)}', space=vmem, size = 0x12000, scoped, tag = 'internal scratch']
  #allocation2 [shape = 'f32[1,1]{1,0:T(1,128)S(1)}', space=vmem, size = 0x200, scoped, tag = 'scoped memory for tpu_custom_call.1']
  %s0 = inlined_call_operand.vmem [shape: f32[14,128], index: 0, kind: input, shape index: {}]
  %s1 = inlined_call_operand.vmem [shape: f32[32,14], index: 1, kind: input, shape index: {}]
  %s2 = inlined_call_operand.vmem [shape: f32[32,1], index: 2, kind: input, shape index: {}]
  %s3 = inlined_call_operand.vmem [shape: f32[32,32], index: 3, kind: input, shape index: {}]
  %s4 = inlined_call_operand.vmem [shape: f32[32,1], index: 4, kind: input, shape index: {}]
  %s5 = inlined_call_operand.vmem [shape: f32[1,32], index: 5, kind: input, shape index: {}]
  %s6 = inlined_call_operand.<no memory space> [shape: f32[1,1], index: 6, kind: input, shape index: {}]
  %s7 = inlined_call_operand.hbm [shape: f32[1,128], index: 7, kind: output, shape index: {}]
  %s8 = sld [smem:[#allocation0]]
  $region38: #{tpu_custom_call.1} parent=0
    _
  %s10 = ssub.s32 1, %s8
  %s11 = scalar_select 0, %s10, %s8
  %v12 = vstv %s6
  %13 = vst [vmem:[#allocation2] sm:$0x1] %v12
  $region1: #{tpu_custom_call.1} parent=0
    #allocation3 [shape = 'u8[512]{0}', space=vmem, size = 0x400, scoped, tag = 'output window, operand 0, single buffered']
    #allocation4 [shape = 's32[1]{0}', space=sflag, size = 0x4, scoped, tag = 'scoped memory for tpu_custom_call.1']
    %14 = vsyncpa [#allocation4], 0
    // Predicated region
    $region2: #{tpu_custom_call.1} parent=1 // pred_check
      _
    $region3: #{tpu_custom_call.1} parent=1 // pred_check_branch
      %16 = sbr.rel (0) target = $region5
    $region4: #{tpu_custom_call.1} parent=1 // pred_region
      _
    $region5: #{tpu_custom_call.1} parent=1 // pred_fallthru
      _
    // Predicated region
    $region6: #{tpu_custom_call.1} parent=1 // pred_check
      _
    $region7: #{tpu_custom_call.1} parent=1 // pred_check_branch
      %18 = sbr.rel (0) target = $region9
    $region8: #{tpu_custom_call.1} parent=1 // pred_region
      _
    $region9: #{tpu_custom_call.1} parent=1 // pred_fallthru
      _
    // Predicated region
    $region10: #{tpu_custom_call.1} parent=1 // pred_check
      _
    $region11: #{tpu_custom_call.1} parent=1 // pred_check_branch
      %20 = sbr.rel (0) target = $region13
    $region12: #{tpu_custom_call.1} parent=1 // pred_region
      _
    $region13: #{tpu_custom_call.1} parent=1 // pred_fallthru
      _
    // Predicated region
    $region14: #{tpu_custom_call.1} parent=1 // pred_check
      _
    $region15: #{tpu_custom_call.1} parent=1 // pred_check_branch
      %22 = sbr.rel (0) target = $region17
    $region16: #{tpu_custom_call.1} parent=1 // pred_region
      _
    $region17: #{tpu_custom_call.1} parent=1 // pred_fallthru
      _
    // Predicated region
    $region18: #{tpu_custom_call.1} parent=1 // pred_check
      _
    $region19: #{tpu_custom_call.1} parent=1 // pred_check_branch
      %24 = sbr.rel (0) target = $region21
    $region20: #{tpu_custom_call.1} parent=1 // pred_region
      _
    $region21: #{tpu_custom_call.1} parent=1 // pred_fallthru
      _
    // Predicated region
    $region22: #{tpu_custom_call.1} parent=1 // pred_check
      _
    $region23: #{tpu_custom_call.1} parent=1 // pred_check_branch
      %26 = sbr.rel (0) target = $region25
    $region24: #{tpu_custom_call.1} parent=1 // pred_region
      _
    $region25: #{tpu_custom_call.1} parent=1 // pred_fallthru
      _
    // Predicated region
    $region26: #{tpu_custom_call.1} parent=1 // pred_check
      _
    $region27: #{tpu_custom_call.1} parent=1 // pred_check_branch
      %28 = sbr.rel (0) target = $region29
    $region28: #{tpu_custom_call.1} parent=1 // pred_region
      _
    $region29: #{tpu_custom_call.1} parent=1 // pred_fallthru
      _
    %v29 = vld [vmem:[%s1] sm:$0xff]
    %v30 = vld [vmem:[%s1 + $0x8] sm:$0xff]
    %v31 = vld [vmem:[%s1 + $0x10] sm:$0xff]
    %v32 = vld [vmem:[%s1 + $0x18] sm:$0xff]
    %v33 = vld [vmem:[%s0] sm:$0xff]
    %v34 = vld [vmem:[%s0 + $0x8] sm:$0x3f]
    %v35 = vld [vmem:[%s2] sm:$0xff]
    %v36 = vld [vmem:[%s2 + $0x8] sm:$0xff]
    %v37 = vld [vmem:[%s2 + $0x10] sm:$0xff]
    %v38 = vld [vmem:[%s2 + $0x18] sm:$0xff]
    %40 = vset.pattern.permute.xlu0 0
    %41 = vperm.xlu0 %40, %v35
    %v42 = vpop.permute.xlu0 %41
    %45 = vset.pattern.permute.xlu0 0
    %46 = vperm.xlu0 %45, %v36
    %v47 = vpop.permute.xlu0 %46
    %50 = vset.pattern.permute.xlu0 0
    %51 = vperm.xlu0 %50, %v37
    %v52 = vpop.permute.xlu0 %51
    %55 = vset.pattern.permute.xlu0 0
    %56 = vperm.xlu0 %55, %v38
    %v57 = vpop.permute.xlu0 %56
    %vm59 = vcmask 113664
    %v61 = vsel %vm59, %v29, 0
    %v64 = vsel %vm59, %v30, 0
    %v67 = vsel %vm59, %v31, 0
    %v70 = vsel %vm59, %v32, 0
    %vm72 = vcmask 1045504
    %v74 = vsel %vm72, %v34, 0
    %76 = vmatprep.subr.mxu0 0.0
    %77 = vmatpush1.msra.mxu0 0.0
    %78 = vmatprep.subr.mxu0 0.0
    %79 = vmatpush1.msra.mxu0 0.0
    %80 = vmatprep.subr.mxu0 0.0
    %81 = vmatpush1.msra.mxu0 0.0
    %82 = vmatprep.subr.mxu0 0.0
    %83 = vmatpush1.msra.mxu0 0.0
    %84 = vmatprep.subr.mxu0 0.0
    %85 = vmatpush1.msra.mxu0 0.0
    %86 = vmatprep.subr.mxu0 0.0
    %87 = vmatpush1.msra.mxu0 0.0
    %88 = vmatprep.subr.mxu0 0.0
    %89 = vmatpush1.msra.mxu0 0.0
    %90 = vmatprep.subr.mxu0 0.0
    %91 = vmatpush1.msra.mxu0 0.0
    %92 = vmatprep.subr.mxu0 0.0
    %93 = vmatpush1.msra.mxu0 0.0
    %94 = vmatprep.subr.mxu0 0.0
    %95 = vmatpush1.msra.mxu0 0.0
    %96 = vmatprep.subr.mxu0 0.0
    %97 = vmatpush1.msra.mxu0 0.0
    %98 = vmatprep.subr.mxu0 0.0
    %99 = vmatpush1.msra.mxu0 0.0
    %100 = vmatprep.subr.mxu0 0.0
    %101 = vmatpush1.msra.mxu0 0.0
    %102 = vmatprep.subr.mxu0 0.0
    %103 = vmatpush1.msra.mxu0 0.0
    %104 = vmatprep.subr.mxu0 0.0
    %105 = vmatpush1.msra.mxu0 %v74
    %106 = vmatprep.subr.mxu0 0.0
    %107 = vmatpush1.msra.mxu0 %v33
    %108 = vmatprep.subr.mxu0 0.0
    %109 = vmatpush2.msra.mxu0 0.0
    %110 = vmatprep.subr.mxu0 0.0
    %111 = vmatpush2.msra.mxu0 0.0
    %112 = vmatprep.subr.mxu0 0.0
    %113 = vmatpush2.msra.mxu0 0.0
    %114 = vmatprep.subr.mxu0 0.0
    %115 = vmatpush2.msra.mxu0 0.0
    %116 = vmatprep.subr.mxu0 0.0
    %117 = vmatpush2.msra.mxu0 0.0
    %118 = vmatprep.subr.mxu0 0.0
    %119 = vmatpush2.msra.mxu0 0.0
    %120 = vmatprep.subr.mxu0 0.0
    %121 = vmatpush2.msra.mxu0 0.0
    %122 = vmatprep.subr.mxu0 0.0
    %123 = vmatpush2.msra.mxu0 0.0
    %124 = vmatprep.subr.mxu0 0.0
    %125 = vmatpush2.msra.mxu0 0.0
    %126 = vmatprep.subr.mxu0 0.0
    %127 = vmatpush2.msra.mxu0 0.0
    %128 = vmatprep.subr.mxu0 0.0
    %129 = vmatpush2.msra.mxu0 0.0
    %130 = vmatprep.subr.mxu0 0.0
    %131 = vmatpush2.msra.mxu0 0.0
    %132 = vmatprep.subr.mxu0 0.0
    %133 = vmatpush2.msra.mxu0 0.0
    %134 = vmatprep.subr.mxu0 0.0
    %135 = vmatpush2.msra.mxu0 0.0
    %136 = vmatprep.subr.mxu0 0.0
    %137 = vmatpush2.msra.mxu0 0.0
    %138 = vmatprep.subr.mxu0 0.0
    %139 = vmatpush2.msra.mxu0 0.0
    %140 = vmatprep.mubr.f32.mxu0 0.0
    %141 = vmatmul.mubr.f32.gmra.mxu0 %v61
    %v142 = vpop.f32.mrf.mxu0
    %v143 = vadd.f32 %v42, %v142
    %v144 = vpop.f32.mrf.mxu0
    %145 = vmatprep.mubr.f32.mxu0 0.0
    %146 = vmatmul.mubr.f32.gmra.mxu0 %v64
    %v147 = vpop.f32.mrf.mxu0
    %v148 = vadd.f32 %v47, %v147
    %v149 = vpop.f32.mrf.mxu0
    %150 = vmatprep.mubr.f32.mxu0 0.0
    %151 = vmatmul.mubr.f32.gmra.mxu0 %v67
    %v152 = vpop.f32.mrf.mxu0
    %v153 = vadd.f32 %v52, %v152
    %v154 = vpop.f32.mrf.mxu0
    %155 = vmatprep.mubr.f32.mxu0 0.0
    %156 = vmatmul.mubr.f32.gmra.mxu0 %v70
    %v157 = vpop.f32.mrf.mxu0
    %v158 = vadd.f32 %v57, %v157
    %v159 = vpop.f32.mrf.mxu0
    %160 = vdwg.mxu0
    %v161 = vtanh.pop %v143
    %v162 = vtanh.pop %v148
    %v163 = vtanh.pop %v153
    %v164 = vtanh.pop %v158
    %v165 = vld [vmem:[%s3] sm:$0xff]
    %v166 = vld [vmem:[%s3 + $0x8] sm:$0xff]
    %v167 = vld [vmem:[%s3 + $0x10] sm:$0xff]
    %v168 = vld [vmem:[%s3 + $0x18] sm:$0xff]
    %v169 = vld [vmem:[%s4] sm:$0xff]
    %v170 = vld [vmem:[%s4 + $0x8] sm:$0xff]
    %v171 = vld [vmem:[%s4 + $0x10] sm:$0xff]
    %v172 = vld [vmem:[%s4 + $0x18] sm:$0xff]
    %174 = vset.pattern.permute.xlu0 0
    %175 = vperm.xlu0 %174, %v169
    %v176 = vpop.permute.xlu0 %175
    %179 = vset.pattern.permute.xlu0 0
    %180 = vperm.xlu0 %179, %v170
    %v181 = vpop.permute.xlu0 %180
    %184 = vset.pattern.permute.xlu0 0
    %185 = vperm.xlu0 %184, %v171
    %v186 = vpop.permute.xlu0 %185
    %189 = vset.pattern.permute.xlu0 0
    %190 = vperm.xlu0 %189, %v172
    %v191 = vpop.permute.xlu0 %190
    %vm193 = vcmask 261120
    %v195 = vsel %vm193, %v165, 0
    %v198 = vsel %vm193, %v166, 0
    %v201 = vsel %vm193, %v167, 0
    %v204 = vsel %vm193, %v168, 0
    %206 = vmatprep.subr.mxu0 0.0
    %207 = vmatpush1.msra.mxu0 0.0
    %208 = vmatprep.subr.mxu0 0.0
    %209 = vmatpush1.msra.mxu0 0.0
    %210 = vmatprep.subr.mxu0 0.0
    %211 = vmatpush1.msra.mxu0 0.0
    %212 = vmatprep.subr.mxu0 0.0
    %213 = vmatpush1.msra.mxu0 0.0
    %214 = vmatprep.subr.mxu0 0.0
    %215 = vmatpush1.msra.mxu0 0.0
    %216 = vmatprep.subr.mxu0 0.0
    %217 = vmatpush1.msra.mxu0 0.0
    %218 = vmatprep.subr.mxu0 0.0
    %219 = vmatpush1.msra.mxu0 0.0
    %220 = vmatprep.subr.mxu0 0.0
    %221 = vmatpush1.msra.mxu0 0.0
    %222 = vmatprep.subr.mxu0 0.0
    %223 = vmatpush1.msra.mxu0 0.0
    %224 = vmatprep.subr.mxu0 0.0
    %225 = vmatpush1.msra.mxu0 0.0
    %226 = vmatprep.subr.mxu0 0.0
    %227 = vmatpush1.msra.mxu0 0.0
    %228 = vmatprep.subr.mxu0 0.0
    %229 = vmatpush1.msra.mxu0 0.0
    %230 = vmatprep.subr.mxu0 0.0
    %231 = vmatpush1.msra.mxu0 %v164
    %232 = vmatprep.subr.mxu0 0.0
    %233 = vmatpush1.msra.mxu0 %v163
    %234 = vmatprep.subr.mxu0 0.0
    %235 = vmatpush1.msra.mxu0 %v162
    %236 = vmatprep.subr.mxu0 0.0
    %237 = vmatpush1.msra.mxu0 %v161
    %238 = vmatprep.subr.mxu0 0.0
    %239 = vmatpush2.msra.mxu0 0.0
    %240 = vmatprep.subr.mxu0 0.0
    %241 = vmatpush2.msra.mxu0 0.0
    %242 = vmatprep.subr.mxu0 0.0
    %243 = vmatpush2.msra.mxu0 0.0
    %244 = vmatprep.subr.mxu0 0.0
    %245 = vmatpush2.msra.mxu0 0.0
    %246 = vmatprep.subr.mxu0 0.0
    %247 = vmatpush2.msra.mxu0 0.0
    %248 = vmatprep.subr.mxu0 0.0
    %249 = vmatpush2.msra.mxu0 0.0
    %250 = vmatprep.subr.mxu0 0.0
    %251 = vmatpush2.msra.mxu0 0.0
    %252 = vmatprep.subr.mxu0 0.0
    %253 = vmatpush2.msra.mxu0 0.0
    %254 = vmatprep.subr.mxu0 0.0
    %255 = vmatpush2.msra.mxu0 0.0
    %256 = vmatprep.subr.mxu0 0.0
    %257 = vmatpush2.msra.mxu0 0.0
    %258 = vmatprep.subr.mxu0 0.0
    %259 = vmatpush2.msra.mxu0 0.0
    %260 = vmatprep.subr.mxu0 0.0
    %261 = vmatpush2.msra.mxu0 0.0
    %262 = vmatprep.subr.mxu0 0.0
    %263 = vmatpush2.msra.mxu0 0.0
    %264 = vmatprep.subr.mxu0 0.0
    %265 = vmatpush2.msra.mxu0 0.0
    %266 = vmatprep.subr.mxu0 0.0
    %267 = vmatpush2.msra.mxu0 0.0
    %268 = vmatprep.subr.mxu0 0.0
    %269 = vmatpush2.msra.mxu0 0.0
    %270 = vmatprep.mubr.f32.mxu0 0.0
    %271 = vmatmul.mubr.f32.gmra.mxu0 %v195
    %v272 = vpop.f32.mrf.mxu0
    %v273 = vadd.f32 %v176, %v272
    %v274 = vpop.f32.mrf.mxu0
    %275 = vmatprep.mubr.f32.mxu0 0.0
    %276 = vmatmul.mubr.f32.gmra.mxu0 %v198
    %v277 = vpop.f32.mrf.mxu0
    %v278 = vadd.f32 %v181, %v277
    %v279 = vpop.f32.mrf.mxu0
    %280 = vmatprep.mubr.f32.mxu0 0.0
    %281 = vmatmul.mubr.f32.gmra.mxu0 %v201
    %v282 = vpop.f32.mrf.mxu0
    %v283 = vadd.f32 %v186, %v282
    %v284 = vpop.f32.mrf.mxu0
    %285 = vmatprep.mubr.f32.mxu0 0.0
    %286 = vmatmul.mubr.f32.gmra.mxu0 %v204
    %v287 = vpop.f32.mrf.mxu0
    %v288 = vadd.f32 %v191, %v287
    %v289 = vpop.f32.mrf.mxu0
    %290 = vdwg.mxu0
    %v291 = vtanh.pop %v273
    %v292 = vtanh.pop %v278
    %v293 = vtanh.pop %v283
    %v294 = vtanh.pop %v288
    %v295 = vld [vmem:[%s5] sm:$0x1]
    %v296 = vld [vmem:[#allocation2] sm:$0x1]
    %298 = vset.pattern.permute.xlu0 0
    %299 = vperm.xlu0 %298, %v296
    %v300 = vpop.permute.xlu0 %299
    %v302 = vlaneseq
    %v303 = vshrl.u32 %v302, 7
    %v304 = vsub.s32 0, %v303
    %v305 = vrot.slane %v300, %v304
    %v307 = vsel %vm193, %v295, 0
    %309 = vmatprep.subr.mxu0 0.0
    %310 = vmatpush1.msra.mxu0 0.0
    %311 = vmatprep.subr.mxu0 0.0
    %312 = vmatpush1.msra.mxu0 0.0
    %313 = vmatprep.subr.mxu0 0.0
    %314 = vmatpush1.msra.mxu0 0.0
    %315 = vmatprep.subr.mxu0 0.0
    %316 = vmatpush1.msra.mxu0 0.0
    %317 = vmatprep.subr.mxu0 0.0
    %318 = vmatpush1.msra.mxu0 0.0
    %319 = vmatprep.subr.mxu0 0.0
    %320 = vmatpush1.msra.mxu0 0.0
    %321 = vmatprep.subr.mxu0 0.0
    %322 = vmatpush1.msra.mxu0 0.0
    %323 = vmatprep.subr.mxu0 0.0
    %324 = vmatpush1.msra.mxu0 0.0
    %325 = vmatprep.subr.mxu0 0.0
    %326 = vmatpush1.msra.mxu0 0.0
    %327 = vmatprep.subr.mxu0 0.0
    %328 = vmatpush1.msra.mxu0 0.0
    %329 = vmatprep.subr.mxu0 0.0
    %330 = vmatpush1.msra.mxu0 0.0
    %331 = vmatprep.subr.mxu0 0.0
    %332 = vmatpush1.msra.mxu0 0.0
    %333 = vmatprep.subr.mxu0 0.0
    %334 = vmatpush1.msra.mxu0 %v294
    %335 = vmatprep.subr.mxu0 0.0
    %336 = vmatpush1.msra.mxu0 %v293
    %337 = vmatprep.subr.mxu0 0.0
    %338 = vmatpush1.msra.mxu0 %v292
    %339 = vmatprep.subr.mxu0 0.0
    %340 = vmatpush1.msra.mxu0 %v291
    %341 = vmatprep.subr.mxu0 0.0
    %342 = vmatpush2.msra.mxu0 0.0
    %343 = vmatprep.subr.mxu0 0.0
    %344 = vmatpush2.msra.mxu0 0.0
    %345 = vmatprep.subr.mxu0 0.0
    %346 = vmatpush2.msra.mxu0 0.0
    %347 = vmatprep.subr.mxu0 0.0
    %348 = vmatpush2.msra.mxu0 0.0
    %349 = vmatprep.subr.mxu0 0.0
    %350 = vmatpush2.msra.mxu0 0.0
    %351 = vmatprep.subr.mxu0 0.0
    %352 = vmatpush2.msra.mxu0 0.0
    %353 = vmatprep.subr.mxu0 0.0
    %354 = vmatpush2.msra.mxu0 0.0
    %355 = vmatprep.subr.mxu0 0.0
    %356 = vmatpush2.msra.mxu0 0.0
    %357 = vmatprep.subr.mxu0 0.0
    %358 = vmatpush2.msra.mxu0 0.0
    %359 = vmatprep.subr.mxu0 0.0
    %360 = vmatpush2.msra.mxu0 0.0
    %361 = vmatprep.subr.mxu0 0.0
    %362 = vmatpush2.msra.mxu0 0.0
    %363 = vmatprep.subr.mxu0 0.0
    %364 = vmatpush2.msra.mxu0 0.0
    %365 = vmatprep.subr.mxu0 0.0
    %366 = vmatpush2.msra.mxu0 0.0
    %367 = vmatprep.subr.mxu0 0.0
    %368 = vmatpush2.msra.mxu0 0.0
    %369 = vmatprep.subr.mxu0 0.0
    %370 = vmatpush2.msra.mxu0 0.0
    %371 = vmatprep.subr.mxu0 0.0
    %372 = vmatpush2.msra.mxu0 0.0
    %373 = vmatprep.mubr.f32.mxu0 0.0
    %374 = vmatmul.mubr.f32.gmra.mxu0 %v307
    %v375 = vpop.f32.mrf.mxu0
    %v376 = vadd.f32 %v305, %v375
    %v377 = vpop.f32.mrf.mxu0
    %378 = vdwg.mxu0
    %v379 = vxor.u32 %v376, 2147483648
    %v380 = vmul.f32 %v379, 1.442695
    %v381 = vpow.pop %v380
    %v382 = vadd.f32 %v381, 1.0
    %v383 = vrcp.pop %v382
    %v384 = vmul.f32 1.0, %v383
    %385 = vst [vmem:[#allocation3] sm:$0x1] %v384
    // Predicated region
    $region30: #{tpu_custom_call.1} parent=1 // pred_check
      _
    $region31: #{tpu_custom_call.1} parent=1 // pred_check_branch
      %387 = sbr.rel (0) target = $region33
    $region32: #{tpu_custom_call.1} parent=1 // pred_region
      %s389 = ssub.s32 16, 16
      %390 = vsyncadd [#allocation4], %s389
      %s392 = sshll.u32 [#allocation3], 4
      %s393 = int_to_ptr.vmem [resolvable:$true] %s392
      %395 = dma.vmem_to_hbm [thread:$0]  %s393, 16, %s7, [#allocation4]
    $region33: #{tpu_custom_call.1} parent=1 // pred_fallthru
      _
    // Predicated region
    $region34: #{tpu_custom_call.1} parent=1 // pred_check
      _
    $region35: #{tpu_custom_call.1} parent=1 // pred_check_branch
      %397 = sbr.rel (0) target = $region37
    $region36: #{tpu_custom_call.1} parent=1 // pred_region
      %398 = dma.done [#allocation4], 16
    $region37: #{tpu_custom_call.1} parent=1 // pred_fallthru
      _
    %399 = vsyncpa [#allocation4], 1

</llo_original>
